<compile_context>
chip_gen: v7x
topology: tpu7x:2x2x1
jax: 0.10.0
libtpu: 0.0.40
codegen_flags: <defaults>
</compile_context>

<pallas_src>
import jax
import jax.numpy as jnp
from jax import lax
from jax.experimental import pallas as pl
from jax.experimental.pallas import tpu as pltpu


# ----------------------------------------------------------------------------
# Fused DoubleConv Pallas kernel (one batch element per grid step).
# ----------------------------------------------------------------------------
def _double_conv_kernel(x_ref, w1_ref, b1_ref, w2_ref, b2_ref, o_ref):
    # Layouts (all lane-dense; lane index = pixel * channel_stride + channel):
    #   x_ref : (1, H+2, K1P)       bf16  halo-padded input slab, K1P >= (W+2)*Cin
    #   w1_ref: (3, K1P, W*MIDP)    bf16  banded conv1 weights (one per dy tap)
    #   b1_ref: (1, W*MIDP)         f32   folded bias, tiled per output pixel
    #   w2_ref: (3, W*MIDP, W*COUT) bf16  banded conv2 weights
    #   b2_ref: (1, W*COUT)         f32
    #   o_ref : (1, H, W*COUT)      f32   lane-dense output slab
    H = o_ref.shape[1]
    M2 = o_ref.shape[2]

    xs = x_ref[0]                                     # (H+2, K1P) bf16, one load

    # --- conv1 + BN + ReLU: 3 row-shifted matmuls (dx/Cin/W folded in weights)
    acc1 = jnp.dot(xs[0:H], w1_ref[0], preferred_element_type=jnp.float32)
    acc1 = acc1 + jnp.dot(xs[1:H + 1], w1_ref[1], preferred_element_type=jnp.float32)
    acc1 = acc1 + jnp.dot(xs[2:H + 2], w1_ref[2], preferred_element_type=jnp.float32)
    h = jnp.maximum(acc1 + b1_ref[...], 0.0).astype(jnp.bfloat16)   # (H, W*MIDP)

    # --- conv2 + BN + ReLU: 3 matmuls directly on the lane-dense intermediate.
    # W-halo is built into the clipped banded weights; H-halo is a 1-sublane
    # roll + row mask of the dy=0 / dy=2 partial products (no scratch, no pad).
    q0 = jnp.dot(h, w2_ref[0], preferred_element_type=jnp.float32)
    q1 = jnp.dot(h, w2_ref[1], preferred_element_type=jnp.float32)
    q2 = jnp.dot(h, w2_ref[2], preferred_element_type=jnp.float32)

    row = lax.broadcasted_iota(jnp.int32, (H, M2), 0)
    acc2 = q1
    acc2 = acc2 + jnp.where(row == 0, 0.0, pltpu.roll(q0, shift=1, axis=0))
    acc2 = acc2 + jnp.where(row == H - 1, 0.0, pltpu.roll(q2, shift=H - 1, axis=0))

    o_ref[0] = jnp.maximum(acc2 + b2_ref[...], 0.0)   # (H, W*COUT) lane-dense store


def _banded_weights(w_hwio, n_src, n_out, diag_of_dx, k_pad, dtype=jnp.bfloat16):
    """Fold the dx taps + all W output pixels of one row into per-dy matrices.

    w_hwio: (3, 3, ci, co).  Returns (3, k_pad, n_out*co) where
      big[dy, p*ci + i, w*co + o] = w_hwio[dy, dx, i, o]  whenever the source
    pixel p and output pixel w lie on the dx diagonal (p = w - diag_of_dx(dx)),
    zero elsewhere (which also realizes the W-direction halo clipping).
    """
    kh, kw, ci, co = w_hwio.shape
    per_dy = []
    for dy in range(kh):
        m = 0.0
        for dx in range(kw):
            sel = jnp.eye(n_src, n_out, k=diag_of_dx(dx), dtype=w_hwio.dtype)
            m = m + jnp.kron(sel, w_hwio[dy, dx])
        per_dy.append(m)
    big = jnp.stack(per_dy)                                  # (3, n_src*ci, n_out*co)
    big = jnp.pad(big, ((0, 0), (0, k_pad - big.shape[1]), (0, 0)))
    return big.astype(dtype)


def double_conv_pallas(xp_nhwc, w1, b1, w2, b2):
    """Fused DoubleConv on a halo-padded NHWC input (BN already folded).

    xp_nhwc: (N, H+2, W+2, Cin) with the 1-pixel zero halo already applied.
    w1: (3,3,Cin,mid) HWIO, b1: (mid,);  w2: (3,3,mid,cout) HWIO, b2: (cout,)
    returns (N, H, W, cout) float32
    """
    N, Hp, Wp, Cin = xp_nhwc.shape
    H, W = Hp - 2, Wp - 2
    mid = w1.shape[-1]
    cout = w2.shape[-1]

    MIDP = ((mid + 7) // 8) * 8           # per-pixel channel stride of the intermediate
    K1 = Wp * Cin                         # lanes of the input slab ((W+2)*Cin)
    K1P = ((K1 + 127) // 128) * 128       # conv1 contraction, 128-lane aligned
    M1 = W * MIDP                         # conv1 output lanes == conv2 contraction
    M2 = W * cout                         # conv2 output lanes

    # Lane-dense halo slab (N, H+2, (W+2)*Cin), zero-padded lanes to K1P, bf16.
    xs = xp_nhwc.astype(jnp.bfloat16).reshape(N, Hp, K1)
    xs = jnp.pad(xs, ((0, 0), (0, 0), (0, K1P - K1)))

    # Banded weights.  conv1 pads mid->MIDP output channels, conv2 pads
    # mid->MIDP input channels so both sides share the MIDP pixel stride
    # (the padded channels stay exactly zero through bias+ReLU).
    w1p = jnp.pad(w1, ((0, 0), (0, 0), (0, 0), (0, MIDP - mid)))
    w2p = jnp.pad(w2, ((0, 0), (0, 0), (0, MIDP - mid), (0, 0)))
    big1 = _banded_weights(w1p, Wp, W, lambda dx: -dx, K1P)      # (3, K1P, M1)
    big2 = _banded_weights(w2p, W, W, lambda dx: 1 - dx, M1)     # (3, M1,  M2)

    b1t = jnp.tile(jnp.pad(b1, (0, MIDP - mid)), W).reshape(1, M1).astype(jnp.float32)
    b2t = jnp.tile(b2, W).reshape(1, M2).astype(jnp.float32)

    flops = 2 * N * H * (3 * K1P * M1 + 3 * M1 * M2)
    bytes_accessed = (xs.size * 2 + big1.size * 2 + big2.size * 2
                      + b1t.size * 4 + b2t.size * 4 + N * H * M2 * 4)

    out = pl.pallas_call(
        _double_conv_kernel,
        out_shape=jax.ShapeDtypeStruct((N, H, M2), jnp.float32),
        grid=(N,),
        in_specs=[
            pl.BlockSpec((1, Hp, K1P), lambda n: (n, 0, 0)),
            pl.BlockSpec((3, K1P, M1), lambda n: (0, 0, 0)),   # resident: same block
            pl.BlockSpec((1, M1), lambda n: (0, 0)),
            pl.BlockSpec((3, M1, M2), lambda n: (0, 0, 0)),    # resident: same block
            pl.BlockSpec((1, M2), lambda n: (0, 0)),
        ],
        out_specs=pl.BlockSpec((1, H, M2), lambda n: (n, 0, 0)),
        compiler_params=pltpu.CompilerParams(
            dimension_semantics=("parallel",)),     # batch across TCs on v7x
        cost_estimate=pl.CostEstimate(
            flops=flops, transcendentals=0, bytes_accessed=bytes_accessed),
    )(xs, big1, b1t, big2, b2t)

    return out.reshape(N, H, W, cout)


# ----------------------------------------------------------------------------
# Plain-JAX glue: bilinear x2 upsample (align_corners=True) and fused padding.
# ----------------------------------------------------------------------------
def bilinear_up2_align_corners(x_nhwc):
    """PyTorch nn.Upsample(scale_factor=2, mode='bilinear', align_corners=True)."""
    N, H, W, C = x_nhwc.shape
    Ho, Wo = 2 * H, 2 * W

    def axis_coords(out_sz, in_sz):
        if in_sz == 1:
            lo = jnp.zeros((out_sz,), jnp.int32)
            return lo, lo, jnp.zeros((out_sz,), jnp.float32)
        src = jnp.arange(out_sz, dtype=jnp.float32) * (in_sz - 1) / (out_sz - 1)
        lo = jnp.floor(src).astype(jnp.int32)
        hi = jnp.minimum(lo + 1, in_sz - 1)
        frac = src - lo.astype(jnp.float32)
        return lo, hi, frac

    y0, y1, fy = axis_coords(Ho, H)
    x0, x1, fx = axis_coords(Wo, W)

    fx_ = fx[None, None, :, None]
    fy_ = fy[None, :, None, None]

    rows0 = x_nhwc[:, y0]           # (N, Ho, W, C)
    rows1 = x_nhwc[:, y1]
    top = rows0[:, :, x0] * (1.0 - fx_) + rows0[:, :, x1] * fx_
    bot = rows1[:, :, x0] * (1.0 - fx_) + rows1[:, :, x1] * fx_
    return top * (1.0 - fy_) + bot * fy_


def pad_to_target_with_halo(x_nhwc, target_h, target_w):
    """F.pad-to-match + the 3x3 conv 1-pixel halo, merged into one pad."""
    dy = target_h - x_nhwc.shape[1]
    dx = target_w - x_nhwc.shape[2]
    return jnp.pad(
        x_nhwc,
        ((0, 0),
         (dy // 2 + 1, dy - dy // 2 + 1),
         (dx // 2 + 1, dx - dx // 2 + 1),
         (0, 0)))


# ----------------------------------------------------------------------------
# Parameter construction (deterministic, synthetic) + BN folding.
# ----------------------------------------------------------------------------
def fold_bn(w_hwio, conv_bias, gamma, beta, mean, var, eps=1e-5):
    s = gamma / jnp.sqrt(var + eps)
    w_f = w_hwio * s[None, None, None, :]
    b_f = (conv_bias - mean) * s + beta
    return w_f, b_f


def make_params(cat_channels, out_channels, key):
    mid_channels = cat_channels // 2
    ks = jax.random.split(key, 6)

    def conv_params(k, cin, cout):
        kw, kb = jax.random.split(k)
        w = 0.1 * jax.random.normal(kw, (3, 3, cin, cout), jnp.float32)  # HWIO
        b = 0.1 * jax.random.normal(kb, (cout,), jnp.float32)
        return w, b

    def bn_params(k, c):
        k1, k2, k3, k4 = jax.random.split(k, 4)
        gamma = 1.0 + 0.1 * jax.random.normal(k1, (c,), jnp.float32)
        beta = 0.1 * jax.random.normal(k2, (c,), jnp.float32)
        mean = 0.1 * jax.random.normal(k3, (c,), jnp.float32)
        var = 0.5 + jax.random.uniform(k4, (c,), jnp.float32)
        return gamma, beta, mean, var

    w1, b1 = conv_params(ks[0], cat_channels, mid_channels)
    w2, b2 = conv_params(ks[1], mid_channels, out_channels)
    g1, be1, m1, v1 = bn_params(ks[2], mid_channels)
    g2, be2, m2, v2 = bn_params(ks[3], out_channels)

    w1f, b1f = fold_bn(w1, b1, g1, be1, m1, v1)
    w2f, b2f = fold_bn(w2, b2, g2, be2, m2, v2)
    return (w1f, b1f, w2f, b2f)


# ----------------------------------------------------------------------------
# Full forward (PyTorch-equivalent). Inputs are NCHW like the torch module.
# ----------------------------------------------------------------------------
def concat_up_forward(x1_nchw, x2_nchw, x3_nchw, params, *, use_pallas=True):
    w1, b1, w2, b2 = params

    to_nhwc = lambda t: jnp.transpose(t, (0, 2, 3, 1))
    to_nchw = lambda t: jnp.transpose(t, (0, 3, 1, 2))

    x1 = bilinear_up2_align_corners(to_nhwc(x1_nchw))
    x2 = bilinear_up2_align_corners(to_nhwc(x2_nchw))
    x3 = to_nhwc(x3_nchw)
    Ht, Wt = x3.shape[1], x3.shape[2]

    # Pad once (match-pad + conv halo), then concat in torch channel order
    # cat([x2, x1], 1) then cat([., x3], 1) -> [x2, x1, x3].
    x1p = pad_to_target_with_halo(x1, Ht, Wt)
    x2p = pad_to_target_with_halo(x2, Ht, Wt)
    x3p = pad_to_target_with_halo(x3, Ht, Wt)
    xp = jnp.concatenate([x2p, x1p, x3p], axis=-1)   # (N, Ht+2, Wt+2, Cin)

    if use_pallas:
        y = double_conv_pallas(xp, w1, b1, w2, b2)
    else:
        # Pure-JAX reference with matching numerics (bf16 in, f32 accumulate).
        x = xp[:, 1:-1, 1:-1, :]

        def conv(xin, w, b):
            o = lax.conv_general_dilated(
                xin.astype(jnp.bfloat16), w.astype(jnp.bfloat16),
                window_strides=(1, 1), padding="SAME",
                dimension_numbers=("NHWC", "HWIO", "NHWC"),
                preferred_element_type=jnp.float32)
            return jnp.maximum(o + b[None, None, None, :], 0.0)

        y = conv(conv(x, w1, b1), w2, b2)

    return to_nchw(y)


# ----------------------------------------------------------------------------
if __name__ == "__main__":
    # Concat_up(in_channels=4, out_channels=8):
    #   cat channels = int(4/2*5) = 10, mid = 5.
    #   x1: 4 ch, x2: 4 ch, x3: 2 ch  ->  4 + 4 + 2 = 10.
    in_channels_arg = 4
    out_channels = 8
    cat_channels = int(in_channels_arg / 2 * 5)     # 10

    key = jax.random.PRNGKey(0)
    k1, k2, k3, kp = jax.random.split(key, 4)

    x1 = jax.random.normal(k1, (2, 4, 8, 8), jnp.float32)     # NCHW
    x2 = jax.random.normal(k2, (2, 4, 8, 8), jnp.float32)     # NCHW
    x3 = jax.random.normal(k3, (2, 2, 16, 16), jnp.float32)   # NCHW

    params = make_params(cat_channels, out_channels, kp)

    out_pallas = concat_up_forward(x1, x2, x3, params, use_pallas=True)
    out_pallas = jax.block_until_ready(out_pallas)

    out_ref = concat_up_forward(x1, x2, x3, params, use_pallas=False)
    out_ref = jax.block_until_ready(out_ref)

    assert out_pallas.shape == (2, out_channels, 16, 16), out_pallas.shape
    max_err = float(jnp.max(jnp.abs(out_pallas - out_ref)))
    # bf16 operands with f32 accumulation -> loose-ish tolerance vs reference.
    assert jnp.allclose(out_pallas, out_ref, rtol=3e-2, atol=3e-2), max_err

    print("KERNEL_OK")
</pallas_src>

<mosaic_0001>
module attributes {stable_mosaic.version = 11 : i64} {
  func.func @_double_conv_kernel(%arg0: i32, %arg1: memref<1x18x256xbf16, #tpu.memory_space<vmem>>, %arg2: memref<3x256x128xbf16, #tpu.memory_space<vmem>>, %arg3: memref<1x128xf32, #tpu.memory_space<vmem>>, %arg4: memref<3x128x128xbf16, #tpu.memory_space<vmem>>, %arg5: memref<1x128xf32, #tpu.memory_space<vmem>>, %arg6: memref<1x16x128xf32, #tpu.memory_space<vmem>>) attributes {dimension_semantics = [#tpu.dimension_semantics<parallel>], iteration_bounds = array<i64: 2>, scalar_prefetch = 0 : i64, scratch_operands = 0 : i64, tpu.core_type = #tpu.core_type<tc>, window_params = [{transform_indices = @transform_0, window_bounds = array<i64: 1, 18, 256>}, {pipeline_mode = #tpu.pipeline_mode<synchronous>, transform_indices = @transform_1, window_bounds = array<i64: 3, 256, 128>}, {pipeline_mode = #tpu.pipeline_mode<synchronous>, transform_indices = @transform_2, window_bounds = array<i64: 1, 128>}, {pipeline_mode = #tpu.pipeline_mode<synchronous>, transform_indices = @transform_3, window_bounds = array<i64: 3, 128, 128>}, {pipeline_mode = #tpu.pipeline_mode<synchronous>, transform_indices = @transform_4, window_bounds = array<i64: 1, 128>}, {transform_indices = @transform_5, window_bounds = array<i64: 1, 16, 128>}]} {
    %c0 = arith.constant 0 : index
    %c0_0 = arith.constant 0 : index
    %c0_1 = arith.constant 0 : index
    %0 = vector.load %arg1[%c0, %c0_0, %c0_1] : memref<1x18x256xbf16, #tpu.memory_space<vmem>>, vector<1x18x256xbf16>
    %1 = vector.shape_cast %0 : vector<1x18x256xbf16> to vector<18x256xbf16>
    %2 = vector.extract_strided_slice %1 {offsets = [0, 0], sizes = [16, 256], strides = [1, 1]} : vector<18x256xbf16> to vector<16x256xbf16>
    %c0_2 = arith.constant 0 : index
    %c0_3 = arith.constant 0 : index
    %c0_4 = arith.constant 0 : index
    %3 = vector.load %arg2[%c0_2, %c0_3, %c0_4] : memref<3x256x128xbf16, #tpu.memory_space<vmem>>, vector<1x256x128xbf16>
    %4 = vector.shape_cast %3 : vector<1x256x128xbf16> to vector<256x128xbf16>
    %cst = arith.constant dense<0.000000e+00> : vector<16x128xf32>
    %5 = tpu.matmul %2, %4, %cst {dimension_numbers = #tpu.dot_dimension_numbers<[1], [0], [0], [1], [0, 0, 1, 1], [], []>} : vector<16x256xbf16>, vector<256x128xbf16>, vector<16x128xf32> -> vector<16x128xf32>
    %6 = vector.extract_strided_slice %1 {offsets = [1, 0], sizes = [16, 256], strides = [1, 1]} : vector<18x256xbf16> to vector<16x256xbf16>
    %c1 = arith.constant 1 : index
    %c0_5 = arith.constant 0 : index
    %c0_6 = arith.constant 0 : index
    %7 = vector.load %arg2[%c1, %c0_5, %c0_6] : memref<3x256x128xbf16, #tpu.memory_space<vmem>>, vector<1x256x128xbf16>
    %8 = vector.shape_cast %7 : vector<1x256x128xbf16> to vector<256x128xbf16>
    %cst_7 = arith.constant dense<0.000000e+00> : vector<16x128xf32>
    %9 = tpu.matmul %6, %8, %cst_7 {dimension_numbers = #tpu.dot_dimension_numbers<[1], [0], [0], [1], [0, 0, 1, 1], [], []>} : vector<16x256xbf16>, vector<256x128xbf16>, vector<16x128xf32> -> vector<16x128xf32>
    %10 = arith.addf %5, %9 : vector<16x128xf32>
    %11 = vector.extract_strided_slice %1 {offsets = [2, 0], sizes = [16, 256], strides = [1, 1]} : vector<18x256xbf16> to vector<16x256xbf16>
    %c2 = arith.constant 2 : index
    %c0_8 = arith.constant 0 : index
    %c0_9 = arith.constant 0 : index
    %12 = vector.load %arg2[%c2, %c0_8, %c0_9] : memref<3x256x128xbf16, #tpu.memory_space<vmem>>, vector<1x256x128xbf16>
    %13 = vector.shape_cast %12 : vector<1x256x128xbf16> to vector<256x128xbf16>
    %cst_10 = arith.constant dense<0.000000e+00> : vector<16x128xf32>
    %14 = tpu.matmul %11, %13, %cst_10 {dimension_numbers = #tpu.dot_dimension_numbers<[1], [0], [0], [1], [0, 0, 1, 1], [], []>} : vector<16x256xbf16>, vector<256x128xbf16>, vector<16x128xf32> -> vector<16x128xf32>
    %15 = arith.addf %10, %14 : vector<16x128xf32>
    %c0_11 = arith.constant 0 : index
    %c0_12 = arith.constant 0 : index
    %16 = vector.load %arg3[%c0_11, %c0_12] : memref<1x128xf32, #tpu.memory_space<vmem>>, vector<1x128xf32>
    %17 = vector.broadcast %16 : vector<1x128xf32> to vector<16x128xf32>
    %18 = arith.addf %15, %17 : vector<16x128xf32>
    %cst_13 = arith.constant 0.000000e+00 : f32
    %19 = vector.broadcast %cst_13 : f32 to vector<16x128xf32>
    %20 = arith.maximumf %18, %19 : vector<16x128xf32>
    %21 = arith.truncf %20 : vector<16x128xf32> to vector<16x128xbf16>
    %c0_14 = arith.constant 0 : index
    %c0_15 = arith.constant 0 : index
    %c0_16 = arith.constant 0 : index
    %22 = vector.load %arg4[%c0_14, %c0_15, %c0_16] : memref<3x128x128xbf16, #tpu.memory_space<vmem>>, vector<1x128x128xbf16>
    %23 = vector.shape_cast %22 : vector<1x128x128xbf16> to vector<128x128xbf16>
    %cst_17 = arith.constant dense<0.000000e+00> : vector<16x128xf32>
    %24 = tpu.matmul %21, %23, %cst_17 {dimension_numbers = #tpu.dot_dimension_numbers<[1], [0], [0], [1], [0, 0, 1, 1], [], []>} : vector<16x128xbf16>, vector<128x128xbf16>, vector<16x128xf32> -> vector<16x128xf32>
    %c1_18 = arith.constant 1 : index
    %c0_19 = arith.constant 0 : index
    %c0_20 = arith.constant 0 : index
    %25 = vector.load %arg4[%c1_18, %c0_19, %c0_20] : memref<3x128x128xbf16, #tpu.memory_space<vmem>>, vector<1x128x128xbf16>
    %26 = vector.shape_cast %25 : vector<1x128x128xbf16> to vector<128x128xbf16>
    %cst_21 = arith.constant dense<0.000000e+00> : vector<16x128xf32>
    %27 = tpu.matmul %21, %26, %cst_21 {dimension_numbers = #tpu.dot_dimension_numbers<[1], [0], [0], [1], [0, 0, 1, 1], [], []>} : vector<16x128xbf16>, vector<128x128xbf16>, vector<16x128xf32> -> vector<16x128xf32>
    %c2_22 = arith.constant 2 : index
    %c0_23 = arith.constant 0 : index
    %c0_24 = arith.constant 0 : index
    %28 = vector.load %arg4[%c2_22, %c0_23, %c0_24] : memref<3x128x128xbf16, #tpu.memory_space<vmem>>, vector<1x128x128xbf16>
    %29 = vector.shape_cast %28 : vector<1x128x128xbf16> to vector<128x128xbf16>
    %cst_25 = arith.constant dense<0.000000e+00> : vector<16x128xf32>
    %30 = tpu.matmul %21, %29, %cst_25 {dimension_numbers = #tpu.dot_dimension_numbers<[1], [0], [0], [1], [0, 0, 1, 1], [], []>} : vector<16x128xbf16>, vector<128x128xbf16>, vector<16x128xf32> -> vector<16x128xf32>
    %31 = tpu.iota {dimensions = array<i32: 0>} : vector<16x128xi32>
    %c0_i32 = arith.constant 0 : i32
    %32 = vector.broadcast %c0_i32 : i32 to vector<16x128xi32>
    %33 = arith.cmpi eq, %31, %32 : vector<16x128xi32>
    %c1_i32 = arith.constant 1 : i32
    %34 = tpu.dynamic_rotate %24 by %c1_i32 dim 0 : vector<16x128xf32>, i32 -> vector<16x128xf32>
    %cst_26 = arith.constant 0.000000e+00 : f32
    %35 = vector.broadcast %cst_26 : f32 to vector<16x128xf32>
    %36 = arith.select %33, %35, %34 : vector<16x128xi1>, vector<16x128xf32>
    %37 = arith.addf %27, %36 : vector<16x128xf32>
    %c15_i32 = arith.constant 15 : i32
    %38 = vector.broadcast %c15_i32 : i32 to vector<16x128xi32>
    %39 = arith.cmpi eq, %31, %38 : vector<16x128xi32>
    %c15_i32_27 = arith.constant 15 : i32
    %40 = tpu.dynamic_rotate %30 by %c15_i32_27 dim 0 : vector<16x128xf32>, i32 -> vector<16x128xf32>
    %cst_28 = arith.constant 0.000000e+00 : f32
    %41 = vector.broadcast %cst_28 : f32 to vector<16x128xf32>
    %42 = arith.select %39, %41, %40 : vector<16x128xi1>, vector<16x128xf32>
    %43 = arith.addf %37, %42 : vector<16x128xf32>
    %c0_29 = arith.constant 0 : index
    %c0_30 = arith.constant 0 : index
    %44 = vector.load %arg5[%c0_29, %c0_30] : memref<1x128xf32, #tpu.memory_space<vmem>>, vector<1x128xf32>
    %45 = vector.broadcast %44 : vector<1x128xf32> to vector<16x128xf32>
    %46 = arith.addf %43, %45 : vector<16x128xf32>
    %cst_31 = arith.constant 0.000000e+00 : f32
    %47 = vector.broadcast %cst_31 : f32 to vector<16x128xf32>
    %48 = arith.maximumf %46, %47 : vector<16x128xf32>
    %c0_32 = arith.constant 0 : index
    %c0_33 = arith.constant 0 : index
    %c0_34 = arith.constant 0 : index
    %49 = vector.load %arg6[%c0_32, %c0_33, %c0_34] : memref<1x16x128xf32, #tpu.memory_space<vmem>>, vector<1x16x128xf32>
    %50 = vector.shape_cast %49 : vector<1x16x128xf32> to vector<16x128xf32>
    %51 = vector.shape_cast %48 : vector<16x128xf32> to vector<1x16x128xf32>
    tpu.vector_store %arg6[%c0_32, %c0_33, %c0_34], %51 {strides = array<i32>} : memref<1x16x128xf32, #tpu.memory_space<vmem>>, vector<1x16x128xf32>,
    return
  }
  func.func @transform_0(%arg0: i32) -> (i32, i32, i32) {
    %c0_i32 = arith.constant 0 : i32
    %c0_i32_0 = arith.constant 0 : i32
    %c0_i32_1 = arith.constant 0 : i32
    return %arg0, %c0_i32, %c0_i32_0 : i32, i32, i32
  }
  func.func @transform_1(%arg0: i32) -> (i32, i32, i32) {
    %c0_i32 = arith.constant 0 : i32
    %c0_i32_0 = arith.constant 0 : i32
    %c0_i32_1 = arith.constant 0 : i32
    %c0_i32_2 = arith.constant 0 : i32
    return %c0_i32, %c0_i32_0, %c0_i32_1 : i32, i32, i32
  }
  func.func @transform_2(%arg0: i32) -> (i32, i32) {
    %c0_i32 = arith.constant 0 : i32
    %c0_i32_0 = arith.constant 0 : i32
    %c0_i32_1 = arith.constant 0 : i32
    return %c0_i32, %c0_i32_0 : i32, i32
  }
  func.func @transform_3(%arg0: i32) -> (i32, i32, i32) {
    %c0_i32 = arith.constant 0 : i32
    %c0_i32_0 = arith.constant 0 : i32
    %c0_i32_1 = arith.constant 0 : i32
    %c0_i32_2 = arith.constant 0 : i32
    return %c0_i32, %c0_i32_0, %c0_i32_1 : i32, i32, i32
  }
  func.func @transform_4(%arg0: i32) -> (i32, i32) {
    %c0_i32 = arith.constant 0 : i32
    %c0_i32_0 = arith.constant 0 : i32
    %c0_i32_1 = arith.constant 0 : i32
    return %c0_i32, %c0_i32_0 : i32, i32
  }
  func.func @transform_5(%arg0: i32) -> (i32, i32, i32) {
    %c0_i32 = arith.constant 0 : i32
    %c0_i32_0 = arith.constant 0 : i32
    %c0_i32_1 = arith.constant 0 : i32
    return %arg0, %c0_i32, %c0_i32_0 : i32, i32, i32
  }
}

</mosaic_0001>

<llo_original>
// kernel: tpu_custom_call.1
$region0: #{tpu_custom_call.1}
  #allocation0 [shape = 'u32[]', space=smem, size = 0x4, offset = 0x4, fixed_abs, tag = 'smem constant byte address 0x4 - core index']
  #allocation1 [shape = 'u32[144,128]{1,0:T(1,128)}', space=vmem, size = 0x12000, scoped, tag = 'internal scratch']
  %s0 = inlined_call_operand.vmem [shape: bf16[2,18,256], index: 0, kind: input, shape index: {}]
  %s1 = inlined_call_operand.hbm [shape: bf16[3,256,128], index: 1, kind: input, shape index: {}]
  %s2 = inlined_call_operand.vmem [shape: f32[1,128], index: 2, kind: input, shape index: {}]
  %s3 = inlined_call_operand.hbm [shape: bf16[3,128,128], index: 3, kind: input, shape index: {}]
  %s4 = inlined_call_operand.vmem [shape: f32[1,128], index: 4, kind: input, shape index: {}]
  %s5 = inlined_call_operand.hbm [shape: f32[2,16,128], index: 5, kind: output, shape index: {}]
  %s6 = sld [smem:[#allocation0]]
  $region61: #{tpu_custom_call.1} parent=0
    _
  %s8 = ssub.s32 1, %s6
  %s9 = scalar_select 0, %s8, %s6
  $region1: #{tpu_custom_call.1} parent=0
    #allocation2 [shape = 'u8[196608]{0}', space=vmem, size = 0x30000, scoped, tag = 'input window, operand 1, single buffered']
    #allocation3 [shape = 's32[2]{0}', space=sflag, size = 0x8, scoped, tag = 'scoped memory for tpu_custom_call.1']
    #allocation4 [shape = 's32[2]{0}', space=sflag, size = 0x8, scoped, tag = 'scoped memory for tpu_custom_call.1']
    #allocation5 [shape = 'u8[98304]{0}', space=vmem, size = 0x18000, scoped, tag = 'input window, operand 3, single buffered']
    #allocation6 [shape = 's32[1]{0}', space=sflag, size = 0x4, scoped, tag = 'scoped memory for tpu_custom_call.1']
    #allocation7 [shape = 'u8[16384]{0}', space=vmem, size = 0x4000, scoped, tag = 'output window, operand 0']
    %10 = vsyncpa [#allocation3], 0
    %11 = vsyncpa [#allocation6], 0
    %12 = vsyncpa [#allocation4], 0
    %s13 = scalar_lea.sflag [#allocation4], 1
    %14 = vsyncpa %s13, 0
    loop: start=0, step=1, limit=4
    $region2: #{tpu_custom_call.1} parent=1 // loop_pre_header
      _
    $region3: #{tpu_custom_call.1} parent=1 // loop_header
      %s16 = sphi 0, %s20
      %p17 = scmp.ge.s32.totalorder %s16, 4
      %s26 = sphi 0, %s28
      %s29 = sphi 0, %s26
      %s30 = sphi 0, %s29
      %s46 = sphi 0, %s30
      %s50 = sphi 0, %s50
      %s52 = sphi 0, %s50
      %s53 = sphi 0, %s52
      %s67 = sphi 0, %s53
      %s71 = sphi 0, %s71
      %s73 = sphi 0, %s71
      %s74 = sphi 0, %s73
      %s88 = sphi 0, %s74
      %s92 = sphi 0, %s92
      %s94 = sphi 0, %s92
      %s95 = sphi 0, %s94
      %s109 = sphi 0, %s95
      %s113 = sphi 0, %s113
      %s115 = sphi 0, %s113
      %s116 = sphi 0, %s115
      %s130 = sphi 0, %s116
      %s136 = sphi 0, %s138
      %s139 = sphi 0, %s136
      %s140 = sphi 0, %s139
      %s156 = sphi 0, %s140
    $region4: #{tpu_custom_call.1} parent=1 // loop_header_branch
      %19 = sbr.rel (%p17) target = $region8
    $region5: #{tpu_custom_call.1} parent=1 // loop_body
      %s21 = ssub.s32 %s16, 1
      %s22 = ssub.s32 %s16, 2
      %s23 = sadd.s32 %s16, 1
      %s24 = ssub.s32 %s16, %s23
      %p25 = scmp.eq.s32.totalorder %s24, 0
      %s27 = sadd.s32 %s26, 1
      %s28 = scalar_select %p25, %s26, %s27
      %p31 = pneg %p25
      %p32 = scmp.eq.s32.totalorder %s16, 1
      %p33 = por %p31, %p32
      %p34 = scmp.ne.s32.totalorder %s26, %s29
      %p35 = scmp.eq.s32.totalorder %s16, 0
      %p36 = por %p34, %p35
      %p37 = scmp.ne.s32.totalorder %s26, %s29
      %p38 = scmp.eq.s32.totalorder %s21, 1
      %p39 = por %p37, %p38
      %p40 = scmp.ne.s32.totalorder %s29, %s30
      %p41 = scmp.eq.s32.totalorder %s21, 0
      %p42 = por %p40, %p41
      %p43 = scmp.ne.s32.totalorder %s29, %s30
      %p44 = scmp.eq.s32.totalorder %s22, 1
      %p45 = por %p43, %p44
      %p47 = scmp.ne.s32.totalorder %s30, %s46
      %p48 = scmp.eq.s32.totalorder %s22, 0
      %p49 = por %p47, %p48
      %s51 = sadd.s32 %s50, 1
      %p54 = scmp.eq.s32.totalorder %s16, 1
      %p55 = scmp.ne.s32.totalorder %s50, %s52
      %p56 = scmp.eq.s32.totalorder %s16, 0
      %p57 = por %p55, %p56
      %p58 = scmp.ne.s32.totalorder %s50, %s52
      %p59 = scmp.eq.s32.totalorder %s21, 1
      %p60 = por %p58, %p59
      %p61 = scmp.ne.s32.totalorder %s52, %s53
      %p62 = scmp.eq.s32.totalorder %s21, 0
      %p63 = por %p61, %p62
      %p64 = scmp.ne.s32.totalorder %s52, %s53
      %p65 = scmp.eq.s32.totalorder %s22, 1
      %p66 = por %p64, %p65
      %p68 = scmp.ne.s32.totalorder %s53, %s67
      %p69 = scmp.eq.s32.totalorder %s22, 0
      %p70 = por %p68, %p69
      %s72 = sadd.s32 %s71, 1
      %p75 = scmp.eq.s32.totalorder %s16, 1
      %p76 = scmp.ne.s32.totalorder %s71, %s73
      %p77 = scmp.eq.s32.totalorder %s16, 0
      %p78 = por %p76, %p77
      %p79 = scmp.ne.s32.totalorder %s71, %s73
      %p80 = scmp.eq.s32.totalorder %s21, 1
      %p81 = por %p79, %p80
      %p82 = scmp.ne.s32.totalorder %s73, %s74
      %p83 = scmp.eq.s32.totalorder %s21, 0
      %p84 = por %p82, %p83
      %p85 = scmp.ne.s32.totalorder %s73, %s74
      %p86 = scmp.eq.s32.totalorder %s22, 1
      %p87 = por %p85, %p86
      %p89 = scmp.ne.s32.totalorder %s74, %s88
      %p90 = scmp.eq.s32.totalorder %s22, 0
      %p91 = por %p89, %p90
      %s93 = sadd.s32 %s92, 1
      %p96 = scmp.eq.s32.totalorder %s16, 1
      %p97 = scmp.ne.s32.totalorder %s92, %s94
      %p98 = scmp.eq.s32.totalorder %s16, 0
      %p99 = por %p97, %p98
      %p100 = scmp.ne.s32.totalorder %s92, %s94
      %p101 = scmp.eq.s32.totalorder %s21, 1
      %p102 = por %p100, %p101
      %p103 = scmp.ne.s32.totalorder %s94, %s95
      %p104 = scmp.eq.s32.totalorder %s21, 0
      %p105 = por %p103, %p104
      %p106 = scmp.ne.s32.totalorder %s94, %s95
      %p107 = scmp.eq.s32.totalorder %s22, 1
      %p108 = por %p106, %p107
      %p110 = scmp.ne.s32.totalorder %s95, %s109
      %p111 = scmp.eq.s32.totalorder %s22, 0
      %p112 = por %p110, %p111
      %s114 = sadd.s32 %s113, 1
      %p117 = scmp.eq.s32.totalorder %s16, 1
      %p118 = scmp.ne.s32.totalorder %s113, %s115
      %p119 = scmp.eq.s32.totalorder %s16, 0
      %p120 = por %p118, %p119
      %p121 = scmp.ne.s32.totalorder %s113, %s115
      %p122 = scmp.eq.s32.totalorder %s21, 1
      %p123 = por %p121, %p122
      %p124 = scmp.ne.s32.totalorder %s115, %s116
      %p125 = scmp.eq.s32.totalorder %s21, 0
      %p126 = por %p124, %p125
      %p127 = scmp.ne.s32.totalorder %s115, %s116
      %p128 = scmp.eq.s32.totalorder %s22, 1
      %p129 = por %p127, %p128
      %p131 = scmp.ne.s32.totalorder %s116, %s130
      %p132 = scmp.eq.s32.totalorder %s22, 0
      %p133 = por %p131, %p132
      %s134 = ssub.s32 %s16, %s23
      %p135 = scmp.eq.s32.totalorder %s134, 0
      %s137 = sadd.s32 %s136, 1
      %s138 = scalar_select %p135, %s136, %s137
      %p141 = pneg %p135
      %p142 = scmp.eq.s32.totalorder %s16, 1
      %p143 = por %p141, %p142
      %p144 = scmp.ne.s32.totalorder %s136, %s139
      %p145 = scmp.eq.s32.totalorder %s16, 0
      %p146 = por %p144, %p145
      %p147 = scmp.ne.s32.totalorder %s136, %s139
      %p148 = scmp.eq.s32.totalorder %s21, 1
      %p149 = por %p147, %p148
      %p150 = scmp.ne.s32.totalorder %s139, %s140
      %p151 = scmp.eq.s32.totalorder %s21, 0
      %p152 = por %p150, %p151
      %p153 = scmp.ne.s32.totalorder %s139, %s140
      %p154 = scmp.eq.s32.totalorder %s22, 1
      %p155 = por %p153, %p154
      %p157 = scmp.ne.s32.totalorder %s140, %s156
      %p158 = scmp.eq.s32.totalorder %s22, 0
      %p159 = por %p157, %p158
      %p160 = scmp.le.s32.totalorder 1, %s16
      %p161 = scmp.lt.s32.totalorder %s16, 3
      %p162 = pnand %p160, %p161
      %p163 = pneg %p162
      // Predicated region
      $region9: #{tpu_custom_call.1} parent=5 // pred_check
        _
      $region10: #{tpu_custom_call.1} parent=5 // pred_check_branch
        %165 = sbr.rel (%p162) target = $region12
      $region11: #{tpu_custom_call.1} parent=5 // pred_region
        %s166 = ssub.s32 %s16, 1
        // Predicated region
        $region13: #{tpu_custom_call.1} parent=11 // pred_check
          %p167 = pneg %p63
        $region14: #{tpu_custom_call.1} parent=11 // pred_check_branch
          %169 = sbr.rel (%p167) target = $region16
        $region15: #{tpu_custom_call.1} parent=11 // pred_region
          %s171 = ssub.s32 6144, 6144
          %172 = vsyncadd [#allocation3], %s171
          %s173 = sshll.u32 [#allocation2], 4
          %s174 = int_to_ptr.vmem [resolvable:$true] %s173
          %179 = dma.hbm_to_vmem [thread:$0]  %s1, 6144, %s174, [#allocation3], 64, 64, 4
        $region16: #{tpu_custom_call.1} parent=11 // pred_fallthru
          _
        // Predicated region
        $region17: #{tpu_custom_call.1} parent=11 // pred_check
          %p180 = pneg %p84
        $region18: #{tpu_custom_call.1} parent=11 // pred_check_branch
          %182 = sbr.rel (%p180) target = $region20
        $region19: #{tpu_custom_call.1} parent=11 // pred_region
          _
        $region20: #{tpu_custom_call.1} parent=11 // pred_fallthru
          _
        // Predicated region
        $region21: #{tpu_custom_call.1} parent=11 // pred_check
          %p183 = pneg %p105
        $region22: #{tpu_custom_call.1} parent=11 // pred_check_branch
          %185 = sbr.rel (%p183) target = $region24
        $region23: #{tpu_custom_call.1} parent=11 // pred_region
          %s187 = ssub.s32 3072, 3072
          %188 = vsyncadd [#allocation6], %s187
          %s189 = sshll.u32 [#allocation5], 4
          %s190 = int_to_ptr.vmem [resolvable:$true] %s189
          %195 = dma.hbm_to_vmem [thread:$0]  %s3, 3072, %s190, [#allocation6], 64, 64, 4
        $region24: #{tpu_custom_call.1} parent=11 // pred_fallthru
          _
        // Predicated region
        $region25: #{tpu_custom_call.1} parent=11 // pred_check
          %p196 = pneg %p126
        $region26: #{tpu_custom_call.1} parent=11 // pred_check_branch
          %198 = sbr.rel (%p196) target = $region28
        $region27: #{tpu_custom_call.1} parent=11 // pred_region
          _
        $region28: #{tpu_custom_call.1} parent=11 // pred_fallthru
          _
      $region12: #{tpu_custom_call.1} parent=5 // pred_fallthru
        _
      %p199 = scmp.lt.s32.totalorder %s16, 2
      // Predicated region
      $region29: #{tpu_custom_call.1} parent=5 // pred_check
        %p200 = pneg %p199
      $region30: #{tpu_custom_call.1} parent=5 // pred_check_branch
        %202 = sbr.rel (%p200) target = $region32
      $region31: #{tpu_custom_call.1} parent=5 // pred_region
        // Predicated region
        $region33: #{tpu_custom_call.1} parent=31 // pred_check
          %p203 = pneg %p36
        $region34: #{tpu_custom_call.1} parent=31 // pred_check_branch
          %205 = sbr.rel (%p203) target = $region36
        $region35: #{tpu_custom_call.1} parent=31 // pred_region
          %p206 = scmp.lt.s32.totalorder %s16, 1
          %s207 = scalar_select %p206, %s16, 1
          %s208 = smul.addr %s207, 6
          %s209 = smul.addr %s208, 4
          %s210 = scalar_lea.vmem %s0, %s209
        $region36: #{tpu_custom_call.1} parent=31 // pred_fallthru
          _
      $region32: #{tpu_custom_call.1} parent=5 // pred_fallthru
        _
      %p211 = scmp.le.s32.totalorder 1, %s16
      %p212 = scmp.lt.s32.totalorder %s16, 3
      %p213 = pnand %p211, %p212
      %p214 = pneg %p213
      // Predicated region
      $region37: #{tpu_custom_call.1} parent=5 // pred_check
        _
      $region38: #{tpu_custom_call.1} parent=5 // pred_check_branch
        %216 = sbr.rel (%p213) target = $region40
      $region39: #{tpu_custom_call.1} parent=5 // pred_region
        %s217 = ssub.s32 %s16, 1
        // Predicated region
        $region41: #{tpu_custom_call.1} parent=39 // pred_check
          %p218 = pneg %p63
        $region42: #{tpu_custom_call.1} parent=39 // pred_check_branch
          %220 = sbr.rel (%p218) target = $region44
        $region43: #{tpu_custom_call.1} parent=39 // pred_region
          %221 = dma.done [#allocation3], 6144
        $region44: #{tpu_custom_call.1} parent=39 // pred_fallthru
          _
        // Predicated region
        $region45: #{tpu_custom_call.1} parent=39 // pred_check
          %p222 = pneg %p105
        $region46: #{tpu_custom_call.1} parent=39 // pred_check_branch
          %224 = sbr.rel (%p222) target = $region48
        $region47: #{tpu_custom_call.1} parent=39 // pred_region
          %225 = dma.done [#allocation6], 3072
        $region48: #{tpu_custom_call.1} parent=39 // pred_fallthru
          _
        %p226 = scmp.lt.s32.totalorder %s21, 1
        %s227 = scalar_select %p226, %s21, 1
        %s228 = smul.addr %s227, 6
        %s229 = smul.addr %s228, 4
        %s230 = scalar_lea.vmem %s0, %s229
        %p231 = pneg %p42
        %p232 = pneg %p39
        %p233 = pneg %p63
        %p234 = pneg %p60
        %p235 = pneg %p84
        %p236 = pneg %p81
        %p237 = pneg %p105
        %p238 = pneg %p102
        %p239 = pneg %p126
        %p240 = pneg %p123
        %p241 = pneg %p152
        %p242 = pneg %p149
        %s243 = sand.u32 %s139, 1
        %s244 = scalar_lea.sflag [#allocation4], %s243
        %s245 = sand.u32 %s139, 1
        %s246 = smul.addr %s245, 16
        %s247 = scalar_lea.vmem [#allocation7], %s246
        %p248 = scmp.lt.s32.totalorder %s21, 1
        %s249 = scalar_select %p248, %s21, 1
        %s250 = smul.addr %s249, 6
        %s251 = smul.addr %s250, 4
        %s252 = scalar_lea.vmem %s0, %s251
        %v254 = vld [vmem:[%s252] sm:$0xff]
        %v255 = vld [vmem:[%s252 + $0x8] sm:$0xff]
        %v256 = vld [vmem:[%s252 + $0x10] sm:$0x11]
        %v257 = vld [vmem:[#allocation2] sm:$0xf]
        %v258 = vld [vmem:[#allocation2 + $0x4] sm:$0xf]
        %v259 = vld [vmem:[#allocation2 + $0x8] sm:$0xf]
        %v260 = vld [vmem:[#allocation2 + $0xc] sm:$0xf]
        %v261 = vld [vmem:[#allocation2 + $0x10] sm:$0xf]
        %v262 = vld [vmem:[#allocation2 + $0x14] sm:$0xf]
        %v263 = vld [vmem:[#allocation2 + $0x18] sm:$0xf]
        %v264 = vld [vmem:[#allocation2 + $0x1c] sm:$0xf]
        %v265 = vld [vmem:[#allocation2 + $0x20] sm:$0xf]
        %v266 = vld [vmem:[#allocation2 + $0x24] sm:$0xf]
        %v267 = vld [vmem:[#allocation2 + $0x28] sm:$0xf]
        %v268 = vld [vmem:[#allocation2 + $0x2c] sm:$0xf]
        %v269 = vld [vmem:[#allocation2 + $0x30] sm:$0xf]
        %v270 = vld [vmem:[#allocation2 + $0x34] sm:$0xf]
        %v271 = vld [vmem:[#allocation2 + $0x38] sm:$0xf]
        %v272 = vld [vmem:[#allocation2 + $0x3c] sm:$0xf]
        %v273 = vld [vmem:[#allocation2 + $0x40] sm:$0xf]
        %v274 = vld [vmem:[#allocation2 + $0x44] sm:$0xf]
        %v275 = vld [vmem:[#allocation2 + $0x48] sm:$0xf]
        %v276 = vld [vmem:[#allocation2 + $0x4c] sm:$0xf]
        %v277 = vld [vmem:[#allocation2 + $0x50] sm:$0xf]
        %v278 = vld [vmem:[#allocation2 + $0x54] sm:$0xf]
        %v279 = vld [vmem:[#allocation2 + $0x58] sm:$0xf]
        %v280 = vld [vmem:[#allocation2 + $0x5c] sm:$0xf]
        %v281 = vld [vmem:[#allocation2 + $0x60] sm:$0xf]
        %v282 = vld [vmem:[#allocation2 + $0x64] sm:$0xf]
        %v283 = vld [vmem:[#allocation2 + $0x68] sm:$0xf]
        %v284 = vld [vmem:[#allocation2 + $0x6c] sm:$0xf]
        %v285 = vld [vmem:[#allocation2 + $0x70] sm:$0xf]
        %v286 = vld [vmem:[#allocation2 + $0x74] sm:$0xf]
        %v287 = vld [vmem:[#allocation2 + $0x78] sm:$0xf]
        %v288 = vld [vmem:[#allocation2 + $0x7c] sm:$0xf]
        %s289 = scalar_lea.vmem [#allocation2], 128
        %v290 = vld [vmem:[%s289] sm:$0xf]
        %v291 = vld [vmem:[%s289 + $0x4] sm:$0xf]
        %v292 = vld [vmem:[%s289 + $0x8] sm:$0xf]
        %v293 = vld [vmem:[%s289 + $0xc] sm:$0xf]
        %v294 = vld [vmem:[%s289 + $0x10] sm:$0xf]
        %v295 = vld [vmem:[%s289 + $0x14] sm:$0xf]
        %v296 = vld [vmem:[%s289 + $0x18] sm:$0xf]
        %v297 = vld [vmem:[%s289 + $0x1c] sm:$0xf]
        %v298 = vld [vmem:[%s289 + $0x20] sm:$0xf]
        %v299 = vld [vmem:[%s289 + $0x24] sm:$0xf]
        %v300 = vld [vmem:[%s289 + $0x28] sm:$0xf]
        %v301 = vld [vmem:[%s289 + $0x2c] sm:$0xf]
        %v302 = vld [vmem:[%s289 + $0x30] sm:$0xf]
        %v303 = vld [vmem:[%s289 + $0x34] sm:$0xf]
        %v304 = vld [vmem:[%s289 + $0x38] sm:$0xf]
        %v305 = vld [vmem:[%s289 + $0x3c] sm:$0xf]
        %v306 = vld [vmem:[%s289 + $0x40] sm:$0xf]
        %v307 = vld [vmem:[%s289 + $0x44] sm:$0xf]
        %v308 = vld [vmem:[%s289 + $0x48] sm:$0xf]
        %v309 = vld [vmem:[%s289 + $0x4c] sm:$0xf]
        %v310 = vld [vmem:[%s289 + $0x50] sm:$0xf]
        %v311 = vld [vmem:[%s289 + $0x54] sm:$0xf]
        %v312 = vld [vmem:[%s289 + $0x58] sm:$0xf]
        %v313 = vld [vmem:[%s289 + $0x5c] sm:$0xf]
        %v314 = vld [vmem:[%s289 + $0x60] sm:$0xf]
        %v315 = vld [vmem:[%s289 + $0x64] sm:$0xf]
        %v316 = vld [vmem:[%s289 + $0x68] sm:$0xf]
        %v317 = vld [vmem:[%s289 + $0x6c] sm:$0xf]
        %v318 = vld [vmem:[%s289 + $0x70] sm:$0xf]
        %v319 = vld [vmem:[%s289 + $0x74] sm:$0xf]
        %v320 = vld [vmem:[%s289 + $0x78] sm:$0xf]
        %v321 = vld [vmem:[%s289 + $0x7c] sm:$0xf]
        %v325 = vunpack.c.l.b16 %v254
        %v326 = vunpack.c.h.b16 %v254
        %v327 = vunpack.c.l.b16 %v255
        %v328 = vunpack.c.h.b16 %v255
        %v329 = vunpack.c.l.b16 %v256
        %v330 = vunpack.c.h.b16 %v256
        %v331 = vpack.c.b16 %v327, %v325
        %v332 = vpack.c.b16 %v328, %v326
        %v333 = vpack.c.b16 %v329, %v329
        %v334 = vpack.c.b16 %v330, %v330
        %vm335 = vsmask.f32 7424
        %v337 = vshrl.u32 %v331, 16
        %v339 = vshll.u32 %v331, 16
        %v341 = vrot.slane %v339, 1
        %v342 = vor.u32 %v337, %v341
        %v344 = vshll.u32 %v333, 16
        %v346 = vrot.slane %v344, 1
        %v347 = vsel %vm335, %v342, %v346
        %v349 = vshrl.u32 %v332, 16
        %v351 = vshll.u32 %v332, 16
        %v353 = vrot.slane %v351, 1
        %v354 = vor.u32 %v349, %v353
        %v356 = vshll.u32 %v334, 16
        %v358 = vrot.slane %v356, 1
        %v359 = vsel %vm335, %v354, %v358
        %v394 = vunpack.c.l.b16 %v290
        %v395 = vunpack.c.l.b16 %v291
        %v396 = vunpack.c.l.b16 %v292
        %v397 = vunpack.c.l.b16 %v293
        %v398 = vunpack.c.l.b16 %v294
        %v399 = vunpack.c.l.b16 %v295
        %v400 = vunpack.c.l.b16 %v296
        %v401 = vunpack.c.l.b16 %v297
        %v402 = vunpack.c.l.b16 %v298
        %v403 = vunpack.c.l.b16 %v299
        %v404 = vunpack.c.l.b16 %v300
        %v405 = vunpack.c.l.b16 %v301
        %v406 = vunpack.c.l.b16 %v302
        %v407 = vunpack.c.l.b16 %v303
        %v408 = vunpack.c.l.b16 %v304
        %v409 = vunpack.c.l.b16 %v305
        %v410 = vunpack.c.l.b16 %v306
        %v411 = vunpack.c.l.b16 %v307
        %v412 = vunpack.c.l.b16 %v308
        %v413 = vunpack.c.l.b16 %v309
        %v414 = vunpack.c.l.b16 %v310
        %v415 = vunpack.c.l.b16 %v311
        %v416 = vunpack.c.l.b16 %v312
        %v417 = vunpack.c.l.b16 %v313
        %v418 = vunpack.c.l.b16 %v314
        %v419 = vunpack.c.l.b16 %v315
        %v420 = vunpack.c.l.b16 %v316
        %v421 = vunpack.c.l.b16 %v317
        %v422 = vunpack.c.l.b16 %v318
        %v423 = vunpack.c.l.b16 %v319
        %v424 = vunpack.c.l.b16 %v320
        %v425 = vunpack.c.l.b16 %v321
        %v426 = vpack.c.b16 %v395, %v394
        %v427 = vpack.c.b16 %v397, %v396
        %v428 = vpack.c.b16 %v399, %v398
        %v429 = vpack.c.b16 %v401, %v400
        %v430 = vpack.c.b16 %v403, %v402
        %v431 = vpack.c.b16 %v405, %v404
        %v432 = vpack.c.b16 %v407, %v406
        %v433 = vpack.c.b16 %v409, %v408
        %v434 = vpack.c.b16 %v411, %v410
        %v435 = vpack.c.b16 %v413, %v412
        %v436 = vpack.c.b16 %v415, %v414
        %v437 = vpack.c.b16 %v417, %v416
        %v438 = vpack.c.b16 %v419, %v418
        %v439 = vpack.c.b16 %v421, %v420
        %v440 = vpack.c.b16 %v423, %v422
        %v441 = vpack.c.b16 %v425, %v424
        %458 = vmatprep.subr.bf16.mxu0 0
        %459 = vmatpush1.bf16.msra.mxu0 %v426
        %460 = vmatprep.subr.bf16.mxu0 0
        %461 = vmatpush1.bf16.msra.mxu0 %v427
        %462 = vmatprep.subr.bf16.mxu0 0
        %463 = vmatpush1.bf16.msra.mxu0 %v428
        %464 = vmatprep.subr.bf16.mxu0 0
        %465 = vmatpush1.bf16.msra.mxu0 %v429
        %466 = vmatprep.subr.bf16.mxu0 0
        %467 = vmatpush1.bf16.msra.mxu0 %v430
        %468 = vmatprep.subr.bf16.mxu0 0
        %469 = vmatpush1.bf16.msra.mxu0 %v431
        %470 = vmatprep.subr.bf16.mxu0 0
        %471 = vmatpush1.bf16.msra.mxu0 %v432
        %472 = vmatprep.subr.bf16.mxu0 0
        %473 = vmatpush1.bf16.msra.mxu0 %v433
        %474 = vmatprep.subr.bf16.mxu0 0
        %475 = vmatpush1.bf16.msra.mxu0 %v434
        %476 = vmatprep.subr.bf16.mxu0 0
        %477 = vmatpush1.bf16.msra.mxu0 %v435
        %478 = vmatprep.subr.bf16.mxu0 0
        %479 = vmatpush1.bf16.msra.mxu0 %v436
        %480 = vmatprep.subr.bf16.mxu0 0
        %481 = vmatpush1.bf16.msra.mxu0 %v437
        %482 = vmatprep.subr.bf16.mxu0 0
        %483 = vmatpush1.bf16.msra.mxu0 %v438
        %484 = vmatprep.subr.bf16.mxu0 0
        %485 = vmatpush1.bf16.msra.mxu0 %v439
        %486 = vmatprep.subr.bf16.mxu0 0
        %487 = vmatpush1.bf16.msra.mxu0 %v440
        %488 = vmatprep.subr.bf16.mxu0 0
        %489 = vmatpush1.bf16.msra.mxu0 %v441
        %490 = vmatprep.mubr.bf16.mxu0 %v359
        %491 = vmatmul.mubr.bf16.gmra.mrb[0].mxu0 %v347
        %v492 = vpop.f32.mrb[0].mxu0
        %v493 = vadd.f32 0.0, %v492
        %v494 = vpop.f32.mrb[0].mxu0
        %v495 = vpop.f32.mrb[0].mxu0
        %v496 = vadd.f32 0.0, %v495
        %v497 = vpop.f32.mrb[0].mxu0
        %498 = vdwg.mxu0
        %v533 = vunpack.c.l.b16 %v257
        %v534 = vunpack.c.l.b16 %v258
        %v535 = vunpack.c.l.b16 %v259
        %v536 = vunpack.c.l.b16 %v260
        %v537 = vunpack.c.l.b16 %v261
        %v538 = vunpack.c.l.b16 %v262
        %v539 = vunpack.c.l.b16 %v263
        %v540 = vunpack.c.l.b16 %v264
        %v541 = vunpack.c.l.b16 %v265
        %v542 = vunpack.c.l.b16 %v266
        %v543 = vunpack.c.l.b16 %v267
        %v544 = vunpack.c.l.b16 %v268
        %v545 = vunpack.c.l.b16 %v269
        %v546 = vunpack.c.l.b16 %v270
        %v547 = vunpack.c.l.b16 %v271
        %v548 = vunpack.c.l.b16 %v272
        %v549 = vunpack.c.l.b16 %v273
        %v550 = vunpack.c.l.b16 %v274
        %v551 = vunpack.c.l.b16 %v275
        %v552 = vunpack.c.l.b16 %v276
        %v553 = vunpack.c.l.b16 %v277
        %v554 = vunpack.c.l.b16 %v278
        %v555 = vunpack.c.l.b16 %v279
        %v556 = vunpack.c.l.b16 %v280
        %v557 = vunpack.c.l.b16 %v281
        %v558 = vunpack.c.l.b16 %v282
        %v559 = vunpack.c.l.b16 %v283
        %v560 = vunpack.c.l.b16 %v284
        %v561 = vunpack.c.l.b16 %v285
        %v562 = vunpack.c.l.b16 %v286
        %v563 = vunpack.c.l.b16 %v287
        %v564 = vunpack.c.l.b16 %v288
        %v565 = vpack.c.b16 %v534, %v533
        %v566 = vpack.c.b16 %v536, %v535
        %v567 = vpack.c.b16 %v538, %v537
        %v568 = vpack.c.b16 %v540, %v539
        %v569 = vpack.c.b16 %v542, %v541
        %v570 = vpack.c.b16 %v544, %v543
        %v571 = vpack.c.b16 %v546, %v545
        %v572 = vpack.c.b16 %v548, %v547
        %v573 = vpack.c.b16 %v550, %v549
        %v574 = vpack.c.b16 %v552, %v551
        %v575 = vpack.c.b16 %v554, %v553
        %v576 = vpack.c.b16 %v556, %v555
        %v577 = vpack.c.b16 %v558, %v557
        %v578 = vpack.c.b16 %v560, %v559
        %v579 = vpack.c.b16 %v562, %v561
        %v580 = vpack.c.b16 %v564, %v563
        %597 = vmatprep.subr.bf16.mxu0 0
        %598 = vmatpush1.bf16.msra.mxu0 %v565
        %599 = vmatprep.subr.bf16.mxu0 0
        %600 = vmatpush1.bf16.msra.mxu0 %v566
        %601 = vmatprep.subr.bf16.mxu0 0
        %602 = vmatpush1.bf16.msra.mxu0 %v567
        %603 = vmatprep.subr.bf16.mxu0 0
        %604 = vmatpush1.bf16.msra.mxu0 %v568
        %605 = vmatprep.subr.bf16.mxu0 0
        %606 = vmatpush1.bf16.msra.mxu0 %v569
        %607 = vmatprep.subr.bf16.mxu0 0
        %608 = vmatpush1.bf16.msra.mxu0 %v570
        %609 = vmatprep.subr.bf16.mxu0 0
        %610 = vmatpush1.bf16.msra.mxu0 %v571
        %611 = vmatprep.subr.bf16.mxu0 0
        %612 = vmatpush1.bf16.msra.mxu0 %v572
        %613 = vmatprep.subr.bf16.mxu0 0
        %614 = vmatpush1.bf16.msra.mxu0 %v573
        %615 = vmatprep.subr.bf16.mxu0 0
        %616 = vmatpush1.bf16.msra.mxu0 %v574
        %617 = vmatprep.subr.bf16.mxu0 0
        %618 = vmatpush1.bf16.msra.mxu0 %v575
        %619 = vmatprep.subr.bf16.mxu0 0
        %620 = vmatpush1.bf16.msra.mxu0 %v576
        %621 = vmatprep.subr.bf16.mxu0 0
        %622 = vmatpush1.bf16.msra.mxu0 %v577
        %623 = vmatprep.subr.bf16.mxu0 0
        %624 = vmatpush1.bf16.msra.mxu0 %v578
        %625 = vmatprep.subr.bf16.mxu0 0
        %626 = vmatpush1.bf16.msra.mxu0 %v579
        %627 = vmatprep.subr.bf16.mxu0 0
        %628 = vmatpush1.bf16.msra.mxu0 %v580
        %629 = vmatprep.mubr.bf16.mxu0 %v332
        %630 = vmatmul.mubr.bf16.gmra.mrb[0].mxu0 %v331
        %v631 = vpop.f32.mrb[0].mxu0
        %v632 = vadd.f32 %v493, %v631
        %v633 = vpop.f32.mrb[0].mxu0
        %v634 = vpop.f32.mrb[0].mxu0
        %v635 = vadd.f32 %v496, %v634
        %v636 = vpop.f32.mrb[0].mxu0
        %637 = vdwg.mxu0
        %s638 = scalar_lea.vmem [#allocation2], 256
        %v639 = vld [vmem:[%s638] sm:$0xf]
        %v640 = vld [vmem:[%s638 + $0x4] sm:$0xf]
        %v641 = vld [vmem:[%s638 + $0x8] sm:$0xf]
        %v642 = vld [vmem:[%s638 + $0xc] sm:$0xf]
        %v643 = vld [vmem:[%s638 + $0x10] sm:$0xf]
        %v644 = vld [vmem:[%s638 + $0x14] sm:$0xf]
        %v645 = vld [vmem:[%s638 + $0x18] sm:$0xf]
        %v646 = vld [vmem:[%s638 + $0x1c] sm:$0xf]
        %v647 = vld [vmem:[%s638 + $0x20] sm:$0xf]
        %v648 = vld [vmem:[%s638 + $0x24] sm:$0xf]
        %v649 = vld [vmem:[%s638 + $0x28] sm:$0xf]
        %v650 = vld [vmem:[%s638 + $0x2c] sm:$0xf]
        %v651 = vld [vmem:[%s638 + $0x30] sm:$0xf]
        %v652 = vld [vmem:[%s638 + $0x34] sm:$0xf]
        %v653 = vld [vmem:[%s638 + $0x38] sm:$0xf]
        %v654 = vld [vmem:[%s638 + $0x3c] sm:$0xf]
        %v655 = vld [vmem:[%s638 + $0x40] sm:$0xf]
        %v656 = vld [vmem:[%s638 + $0x44] sm:$0xf]
        %v657 = vld [vmem:[%s638 + $0x48] sm:$0xf]
        %v658 = vld [vmem:[%s638 + $0x4c] sm:$0xf]
        %v659 = vld [vmem:[%s638 + $0x50] sm:$0xf]
        %v660 = vld [vmem:[%s638 + $0x54] sm:$0xf]
        %v661 = vld [vmem:[%s638 + $0x58] sm:$0xf]
        %v662 = vld [vmem:[%s638 + $0x5c] sm:$0xf]
        %v663 = vld [vmem:[%s638 + $0x60] sm:$0xf]
        %v664 = vld [vmem:[%s638 + $0x64] sm:$0xf]
        %v665 = vld [vmem:[%s638 + $0x68] sm:$0xf]
        %v666 = vld [vmem:[%s638 + $0x6c] sm:$0xf]
        %v667 = vld [vmem:[%s638 + $0x70] sm:$0xf]
        %v668 = vld [vmem:[%s638 + $0x74] sm:$0xf]
        %v669 = vld [vmem:[%s638 + $0x78] sm:$0xf]
        %v670 = vld [vmem:[%s638 + $0x7c] sm:$0xf]
        %vm671 = vcmask 1046528
        %v672 = vrot.slane %v331, 1
        %v673 = vrot.slane %v333, 1
        %v674 = vsel %vm671, %v672, %v673
        %v675 = vrot.slane %v332, 1
        %v676 = vrot.slane %v334, 1
        %v677 = vsel %vm671, %v675, %v676
        %v712 = vunpack.c.l.b16 %v639
        %v713 = vunpack.c.l.b16 %v640
        %v714 = vunpack.c.l.b16 %v641
        %v715 = vunpack.c.l.b16 %v642
        %v716 = vunpack.c.l.b16 %v643
        %v717 = vunpack.c.l.b16 %v644
        %v718 = vunpack.c.l.b16 %v645
        %v719 = vunpack.c.l.b16 %v646
        %v720 = vunpack.c.l.b16 %v647
        %v721 = vunpack.c.l.b16 %v648
        %v722 = vunpack.c.l.b16 %v649
        %v723 = vunpack.c.l.b16 %v650
        %v724 = vunpack.c.l.b16 %v651
        %v725 = vunpack.c.l.b16 %v652
        %v726 = vunpack.c.l.b16 %v653
        %v727 = vunpack.c.l.b16 %v654
        %v728 = vunpack.c.l.b16 %v655
        %v729 = vunpack.c.l.b16 %v656
        %v730 = vunpack.c.l.b16 %v657
        %v731 = vunpack.c.l.b16 %v658
        %v732 = vunpack.c.l.b16 %v659
        %v733 = vunpack.c.l.b16 %v660
        %v734 = vunpack.c.l.b16 %v661
        %v735 = vunpack.c.l.b16 %v662
        %v736 = vunpack.c.l.b16 %v663
        %v737 = vunpack.c.l.b16 %v664
        %v738 = vunpack.c.l.b16 %v665
        %v739 = vunpack.c.l.b16 %v666
        %v740 = vunpack.c.l.b16 %v667
        %v741 = vunpack.c.l.b16 %v668
        %v742 = vunpack.c.l.b16 %v669
        %v743 = vunpack.c.l.b16 %v670
        %v744 = vpack.c.b16 %v713, %v712
        %v745 = vpack.c.b16 %v715, %v714
        %v746 = vpack.c.b16 %v717, %v716
        %v747 = vpack.c.b16 %v719, %v718
        %v748 = vpack.c.b16 %v721, %v720
        %v749 = vpack.c.b16 %v723, %v722
        %v750 = vpack.c.b16 %v725, %v724
        %v751 = vpack.c.b16 %v727, %v726
        %v752 = vpack.c.b16 %v729, %v728
        %v753 = vpack.c.b16 %v731, %v730
        %v754 = vpack.c.b16 %v733, %v732
        %v755 = vpack.c.b16 %v735, %v734
        %v756 = vpack.c.b16 %v737, %v736
        %v757 = vpack.c.b16 %v739, %v738
        %v758 = vpack.c.b16 %v741, %v740
        %v759 = vpack.c.b16 %v743, %v742
        %776 = vmatprep.subr.bf16.mxu0 0
        %777 = vmatpush1.bf16.msra.mxu0 %v744
        %778 = vmatprep.subr.bf16.mxu0 0
        %779 = vmatpush1.bf16.msra.mxu0 %v745
        %780 = vmatprep.subr.bf16.mxu0 0
        %781 = vmatpush1.bf16.msra.mxu0 %v746
        %782 = vmatprep.subr.bf16.mxu0 0
        %783 = vmatpush1.bf16.msra.mxu0 %v747
        %784 = vmatprep.subr.bf16.mxu0 0
        %785 = vmatpush1.bf16.msra.mxu0 %v748
        %786 = vmatprep.subr.bf16.mxu0 0
        %787 = vmatpush1.bf16.msra.mxu0 %v749
        %788 = vmatprep.subr.bf16.mxu0 0
        %789 = vmatpush1.bf16.msra.mxu0 %v750
        %790 = vmatprep.subr.bf16.mxu0 0
        %791 = vmatpush1.bf16.msra.mxu0 %v751
        %792 = vmatprep.subr.bf16.mxu0 0
        %793 = vmatpush1.bf16.msra.mxu0 %v752
        %794 = vmatprep.subr.bf16.mxu0 0
        %795 = vmatpush1.bf16.msra.mxu0 %v753
        %796 = vmatprep.subr.bf16.mxu0 0
        %797 = vmatpush1.bf16.msra.mxu0 %v754
        %798 = vmatprep.subr.bf16.mxu0 0
        %799 = vmatpush1.bf16.msra.mxu0 %v755
        %800 = vmatprep.subr.bf16.mxu0 0
        %801 = vmatpush1.bf16.msra.mxu0 %v756
        %802 = vmatprep.subr.bf16.mxu0 0
        %803 = vmatpush1.bf16.msra.mxu0 %v757
        %804 = vmatprep.subr.bf16.mxu0 0
        %805 = vmatpush1.bf16.msra.mxu0 %v758
        %806 = vmatprep.subr.bf16.mxu0 0
        %807 = vmatpush1.bf16.msra.mxu0 %v759
        %808 = vmatprep.mubr.bf16.mxu0 %v677
        %809 = vmatmul.mubr.bf16.gmra.mrb[0].mxu0 %v674
        %v810 = vpop.f32.mrb[0].mxu0
        %v811 = vadd.f32 0.0, %v810
        %v812 = vpop.f32.mrb[0].mxu0
        %v813 = vpop.f32.mrb[0].mxu0
        %v814 = vadd.f32 0.0, %v813
        %v815 = vpop.f32.mrb[0].mxu0
        %816 = vdwg.mxu0
        %v817 = vadd.f32 %v632, %v811
        %v818 = vadd.f32 %v635, %v814
        %v819 = vld [vmem:[%s2] sm:$0x1]
        %v821 = vlaneseq
        %v822 = vshrl.u32 %v821, 7
        %v823 = vsub.s32 0, %v822
        %v824 = vrot.slane %v819, %v823
        %v826 = vadd.f32 %v817, %v824
        %v827 = vadd.f32 %v818, %v824
        %v828 = vmax.f32 %v826, 0.0
        %v829 = vmax.f32 %v827, 0.0
        %v830 = vpack.c.bf16 %v829, %v828
        %v831 = vld [vmem:[#allocation5] sm:$0xf]
        %v832 = vld [vmem:[#allocation5 + $0x4] sm:$0xf]
        %v833 = vld [vmem:[#allocation5 + $0x8] sm:$0xf]
        %v834 = vld [vmem:[#allocation5 + $0xc] sm:$0xf]
        %v835 = vld [vmem:[#allocation5 + $0x10] sm:$0xf]
        %v836 = vld [vmem:[#allocation5 + $0x14] sm:$0xf]
        %v837 = vld [vmem:[#allocation5 + $0x18] sm:$0xf]
        %v838 = vld [vmem:[#allocation5 + $0x1c] sm:$0xf]
        %v839 = vld [vmem:[#allocation5 + $0x20] sm:$0xf]
        %v840 = vld [vmem:[#allocation5 + $0x24] sm:$0xf]
        %v841 = vld [vmem:[#allocation5 + $0x28] sm:$0xf]
        %v842 = vld [vmem:[#allocation5 + $0x2c] sm:$0xf]
        %v843 = vld [vmem:[#allocation5 + $0x30] sm:$0xf]
        %v844 = vld [vmem:[#allocation5 + $0x34] sm:$0xf]
        %v845 = vld [vmem:[#allocation5 + $0x38] sm:$0xf]
        %v846 = vld [vmem:[#allocation5 + $0x3c] sm:$0xf]
        %v863 = vunpack.c.l.b16 %v831
        %v864 = vunpack.c.l.b16 %v832
        %v865 = vunpack.c.l.b16 %v833
        %v866 = vunpack.c.l.b16 %v834
        %v867 = vunpack.c.l.b16 %v835
        %v868 = vunpack.c.l.b16 %v836
        %v869 = vunpack.c.l.b16 %v837
        %v870 = vunpack.c.l.b16 %v838
        %v871 = vunpack.c.l.b16 %v839
        %v872 = vunpack.c.l.b16 %v840
        %v873 = vunpack.c.l.b16 %v841
        %v874 = vunpack.c.l.b16 %v842
        %v875 = vunpack.c.l.b16 %v843
        %v876 = vunpack.c.l.b16 %v844
        %v877 = vunpack.c.l.b16 %v845
        %v878 = vunpack.c.l.b16 %v846
        %v879 = vpack.c.b16 %v864, %v863
        %v880 = vpack.c.b16 %v866, %v865
        %v881 = vpack.c.b16 %v868, %v867
        %v882 = vpack.c.b16 %v870, %v869
        %v883 = vpack.c.b16 %v872, %v871
        %v884 = vpack.c.b16 %v874, %v873
        %v885 = vpack.c.b16 %v876, %v875
        %v886 = vpack.c.b16 %v878, %v877
        %895 = vmatprep.subr.bf16.mxu0 0
        %896 = vmatpush1.bf16.msra.mxu0 %v879
        %897 = vmatprep.subr.bf16.mxu0 0
        %898 = vmatpush1.bf16.msra.mxu0 %v880
        %899 = vmatprep.subr.bf16.mxu0 0
        %900 = vmatpush1.bf16.msra.mxu0 %v881
        %901 = vmatprep.subr.bf16.mxu0 0
        %902 = vmatpush1.bf16.msra.mxu0 %v882
        %903 = vmatprep.subr.bf16.mxu0 0
        %904 = vmatpush1.bf16.msra.mxu0 %v883
        %905 = vmatprep.subr.bf16.mxu0 0
        %906 = vmatpush1.bf16.msra.mxu0 %v884
        %907 = vmatprep.subr.bf16.mxu0 0
        %908 = vmatpush1.bf16.msra.mxu0 %v885
        %909 = vmatprep.subr.bf16.mxu0 0
        %910 = vmatpush1.bf16.msra.mxu0 %v886
        %911 = vmatprep.subr.bf16.mxu0 0
        %912 = vmatpush1.bf16.msra.mxu0 0
        %913 = vmatprep.subr.bf16.mxu0 0
        %914 = vmatpush1.bf16.msra.mxu0 0
        %915 = vmatprep.subr.bf16.mxu0 0
        %916 = vmatpush1.bf16.msra.mxu0 0
        %917 = vmatprep.subr.bf16.mxu0 0
        %918 = vmatpush1.bf16.msra.mxu0 0
        %919 = vmatprep.subr.bf16.mxu0 0
        %920 = vmatpush1.bf16.msra.mxu0 0
        %921 = vmatprep.subr.bf16.mxu0 0
        %922 = vmatpush1.bf16.msra.mxu0 0
        %923 = vmatprep.subr.bf16.mxu0 0
        %924 = vmatpush1.bf16.msra.mxu0 0
        %925 = vmatprep.subr.bf16.mxu0 0
        %926 = vmatpush1.bf16.msra.mxu0 0
        %927 = vmatprep.mubr.bf16.mxu0 0
        %928 = vmatmul.mubr.bf16.gmra.mrb[0].mxu0 %v830
        %v929 = vpop.f32.mrb[0].mxu0
        %v930 = vadd.f32 0.0, %v929
        %v931 = vpop.f32.mrb[0].mxu0
        %v932 = vpop.f32.mrb[0].mxu0
        %v933 = vadd.f32 0.0, %v932
        %v934 = vpop.f32.mrb[0].mxu0
        %935 = vdwg.mxu0
        %s936 = scalar_lea.vmem [#allocation5], 64
        %v937 = vld [vmem:[%s936] sm:$0xf]
        %v938 = vld [vmem:[%s936 + $0x4] sm:$0xf]
        %v939 = vld [vmem:[%s936 + $0x8] sm:$0xf]
        %v940 = vld [vmem:[%s936 + $0xc] sm:$0xf]
        %v941 = vld [vmem:[%s936 + $0x10] sm:$0xf]
        %v942 = vld [vmem:[%s936 + $0x14] sm:$0xf]
        %v943 = vld [vmem:[%s936 + $0x18] sm:$0xf]
        %v944 = vld [vmem:[%s936 + $0x1c] sm:$0xf]
        %v945 = vld [vmem:[%s936 + $0x20] sm:$0xf]
        %v946 = vld [vmem:[%s936 + $0x24] sm:$0xf]
        %v947 = vld [vmem:[%s936 + $0x28] sm:$0xf]
        %v948 = vld [vmem:[%s936 + $0x2c] sm:$0xf]
        %v949 = vld [vmem:[%s936 + $0x30] sm:$0xf]
        %v950 = vld [vmem:[%s936 + $0x34] sm:$0xf]
        %v951 = vld [vmem:[%s936 + $0x38] sm:$0xf]
        %v952 = vld [vmem:[%s936 + $0x3c] sm:$0xf]
        %s953 = scalar_lea.vmem [#allocation5], 128
        %v954 = vld [vmem:[%s953] sm:$0xf]
        %v955 = vld [vmem:[%s953 + $0x4] sm:$0xf]
        %v956 = vld [vmem:[%s953 + $0x8] sm:$0xf]
        %v957 = vld [vmem:[%s953 + $0xc] sm:$0xf]
        %v958 = vld [vmem:[%s953 + $0x10] sm:$0xf]
        %v959 = vld [vmem:[%s953 + $0x14] sm:$0xf]
        %v960 = vld [vmem:[%s953 + $0x18] sm:$0xf]
        %v961 = vld [vmem:[%s953 + $0x1c] sm:$0xf]
        %v962 = vld [vmem:[%s953 + $0x20] sm:$0xf]
        %v963 = vld [vmem:[%s953 + $0x24] sm:$0xf]
        %v964 = vld [vmem:[%s953 + $0x28] sm:$0xf]
        %v965 = vld [vmem:[%s953 + $0x2c] sm:$0xf]
        %v966 = vld [vmem:[%s953 + $0x30] sm:$0xf]
        %v967 = vld [vmem:[%s953 + $0x34] sm:$0xf]
        %v968 = vld [vmem:[%s953 + $0x38] sm:$0xf]
        %v969 = vld [vmem:[%s953 + $0x3c] sm:$0xf]
        %v986 = vunpack.c.l.b16 %v954
        %v987 = vunpack.c.l.b16 %v955
        %v988 = vunpack.c.l.b16 %v956
        %v989 = vunpack.c.l.b16 %v957
        %v990 = vunpack.c.l.b16 %v958
        %v991 = vunpack.c.l.b16 %v959
        %v992 = vunpack.c.l.b16 %v960
        %v993 = vunpack.c.l.b16 %v961
        %v994 = vunpack.c.l.b16 %v962
        %v995 = vunpack.c.l.b16 %v963
        %v996 = vunpack.c.l.b16 %v964
        %v997 = vunpack.c.l.b16 %v965
        %v998 = vunpack.c.l.b16 %v966
        %v999 = vunpack.c.l.b16 %v967
        %v1000 = vunpack.c.l.b16 %v968
        %v1001 = vunpack.c.l.b16 %v969
        %v1002 = vpack.c.b16 %v987, %v986
        %v1003 = vpack.c.b16 %v989, %v988
        %v1004 = vpack.c.b16 %v991, %v990
        %v1005 = vpack.c.b16 %v993, %v992
        %v1006 = vpack.c.b16 %v995, %v994
        %v1007 = vpack.c.b16 %v997, %v996
        %v1008 = vpack.c.b16 %v999, %v998
        %v1009 = vpack.c.b16 %v1001, %v1000
        %1018 = vmatprep.subr.bf16.mxu0 0
        %1019 = vmatpush1.bf16.msra.mxu0 %v1002
        %1020 = vmatprep.subr.bf16.mxu0 0
        %1021 = vmatpush1.bf16.msra.mxu0 %v1003
        %1022 = vmatprep.subr.bf16.mxu0 0
        %1023 = vmatpush1.bf16.msra.mxu0 %v1004
        %1024 = vmatprep.subr.bf16.mxu0 0
        %1025 = vmatpush1.bf16.msra.mxu0 %v1005
        %1026 = vmatprep.subr.bf16.mxu0 0
        %1027 = vmatpush1.bf16.msra.mxu0 %v1006
        %1028 = vmatprep.subr.bf16.mxu0 0
        %1029 = vmatpush1.bf16.msra.mxu0 %v1007
        %1030 = vmatprep.subr.bf16.mxu0 0
        %1031 = vmatpush1.bf16.msra.mxu0 %v1008
        %1032 = vmatprep.subr.bf16.mxu0 0
        %1033 = vmatpush1.bf16.msra.mxu0 %v1009
        %1034 = vmatprep.subr.bf16.mxu0 0
        %1035 = vmatpush1.bf16.msra.mxu0 0
        %1036 = vmatprep.subr.bf16.mxu0 0
        %1037 = vmatpush1.bf16.msra.mxu0 0
        %1038 = vmatprep.subr.bf16.mxu0 0
        %1039 = vmatpush1.bf16.msra.mxu0 0
        %1040 = vmatprep.subr.bf16.mxu0 0
        %1041 = vmatpush1.bf16.msra.mxu0 0
        %1042 = vmatprep.subr.bf16.mxu0 0
        %1043 = vmatpush1.bf16.msra.mxu0 0
        %1044 = vmatprep.subr.bf16.mxu0 0
        %1045 = vmatpush1.bf16.msra.mxu0 0
        %1046 = vmatprep.subr.bf16.mxu0 0
        %1047 = vmatpush1.bf16.msra.mxu0 0
        %1048 = vmatprep.subr.bf16.mxu0 0
        %1049 = vmatpush1.bf16.msra.mxu0 0
        %1050 = vmatprep.mubr.bf16.mxu0 0
        %1051 = vmatmul.mubr.bf16.gmra.mrb[0].mxu0 %v830
        %v1052 = vpop.f32.mrb[0].mxu0
        %v1053 = vadd.f32 0.0, %v1052
        %v1054 = vpop.f32.mrb[0].mxu0
        %v1055 = vpop.f32.mrb[0].mxu0
        %v1056 = vadd.f32 0.0, %v1055
        %v1057 = vpop.f32.mrb[0].mxu0
        %1058 = vdwg.mxu0
        %v1059 = vlaneseq
        %v1060 = vshrl.u32 %v1059, 7
        %v1061 = vadd.s32 %v1060, 8
        %vm1062 = vcmp.eq.s32.totalorder %v1060, 0
        %vm1063 = vcmp.eq.s32.totalorder %v1061, 0
        %v1064 = vrot.slane %v930, 7
        %v1065 = vrot.slane %v933, 7
        %vm1066 = vcmp.lt.s32.totalorder %v1060, 1
        %v1067 = vsel %vm1066, %v1064, %v1065
        %v1068 = vsel %vm1066, %v1065, %v1064
        %v1069 = vsel %vm1062, 0.0, %v1068
        %v1070 = vsel %vm1063, 0.0, %v1067
        %v1087 = vunpack.c.l.b16 %v937
        %v1088 = vunpack.c.l.b16 %v938
        %v1089 = vunpack.c.l.b16 %v939
        %v1090 = vunpack.c.l.b16 %v940
        %v1091 = vunpack.c.l.b16 %v941
        %v1092 = vunpack.c.l.b16 %v942
        %v1093 = vunpack.c.l.b16 %v943
        %v1094 = vunpack.c.l.b16 %v944
        %v1095 = vunpack.c.l.b16 %v945
        %v1096 = vunpack.c.l.b16 %v946
        %v1097 = vunpack.c.l.b16 %v947
        %v1098 = vunpack.c.l.b16 %v948
        %v1099 = vunpack.c.l.b16 %v949
        %v1100 = vunpack.c.l.b16 %v950
        %v1101 = vunpack.c.l.b16 %v951
        %v1102 = vunpack.c.l.b16 %v952
        %v1103 = vpack.c.b16 %v1088, %v1087
        %v1104 = vpack.c.b16 %v1090, %v1089
        %v1105 = vpack.c.b16 %v1092, %v1091
        %v1106 = vpack.c.b16 %v1094, %v1093
        %v1107 = vpack.c.b16 %v1096, %v1095
        %v1108 = vpack.c.b16 %v1098, %v1097
        %v1109 = vpack.c.b16 %v1100, %v1099
        %v1110 = vpack.c.b16 %v1102, %v1101
        %1119 = vmatprep.subr.bf16.mxu0 0
        %1120 = vmatpush1.bf16.msra.mxu0 %v1103
        %1121 = vmatprep.subr.bf16.mxu0 0
        %1122 = vmatpush1.bf16.msra.mxu0 %v1104
        %1123 = vmatprep.subr.bf16.mxu0 0
        %1124 = vmatpush1.bf16.msra.mxu0 %v1105
        %1125 = vmatprep.subr.bf16.mxu0 0
        %1126 = vmatpush1.bf16.msra.mxu0 %v1106
        %1127 = vmatprep.subr.bf16.mxu0 0
        %1128 = vmatpush1.bf16.msra.mxu0 %v1107
        %1129 = vmatprep.subr.bf16.mxu0 0
        %1130 = vmatpush1.bf16.msra.mxu0 %v1108
        %1131 = vmatprep.subr.bf16.mxu0 0
        %1132 = vmatpush1.bf16.msra.mxu0 %v1109
        %1133 = vmatprep.subr.bf16.mxu0 0
        %1134 = vmatpush1.bf16.msra.mxu0 %v1110
        %1135 = vmatprep.subr.bf16.mxu0 0
        %1136 = vmatpush1.bf16.msra.mxu0 0
        %1137 = vmatprep.subr.bf16.mxu0 0
        %1138 = vmatpush1.bf16.msra.mxu0 0
        %1139 = vmatprep.subr.bf16.mxu0 0
        %1140 = vmatpush1.bf16.msra.mxu0 0
        %1141 = vmatprep.subr.bf16.mxu0 0
        %1142 = vmatpush1.bf16.msra.mxu0 0
        %1143 = vmatprep.subr.bf16.mxu0 0
        %1144 = vmatpush1.bf16.msra.mxu0 0
        %1145 = vmatprep.subr.bf16.mxu0 0
        %1146 = vmatpush1.bf16.msra.mxu0 0
        %1147 = vmatprep.subr.bf16.mxu0 0
        %1148 = vmatpush1.bf16.msra.mxu0 0
        %1149 = vmatprep.subr.bf16.mxu0 0
        %1150 = vmatpush1.bf16.msra.mxu0 0
        %1151 = vmatprep.mubr.bf16.mxu0 0
        %1152 = vmatmul.mubr.bf16.gmra.mrb[0].mxu0 %v830
        %v1153 = vpop.f32.mrb[0].mxu0
        %v1154 = vadd.f32 %v1069, %v1153
        %v1155 = vpop.f32.mrb[0].mxu0
        %v1156 = vpop.f32.mrb[0].mxu0
        %v1157 = vadd.f32 %v1070, %v1156
        %v1158 = vpop.f32.mrb[0].mxu0
        %1159 = vdwg.mxu0
        %vm1160 = vcmp.eq.s32.totalorder %v1060, 15
        %vm1161 = vcmp.eq.s32.totalorder %v1061, 15
        %v1162 = vrot.slane %v1053, 1
        %v1163 = vrot.slane %v1056, 1
        %vm1164 = vcmp.lt.s32.totalorder %v1060, 7
        %v1165 = vsel %vm1164, %v1162, %v1163
        %v1166 = vsel %vm1164, %v1163, %v1162
        %v1167 = vsel %vm1160, 0.0, %v1165
        %v1168 = vsel %vm1161, 0.0, %v1166
        %v1169 = vadd.f32 %v1154, %v1167
        %v1170 = vadd.f32 %v1157, %v1168
        %v1171 = vld [vmem:[%s4] sm:$0x1]
        %v1173 = vlaneseq
        %v1174 = vshrl.u32 %v1173, 7
        %v1175 = vsub.s32 0, %v1174
        %v1176 = vrot.slane %v1171, %v1175
        %v1178 = vadd.f32 %v1169, %v1176
        %v1179 = vadd.f32 %v1170, %v1176
        %v1180 = vmax.f32 %v1178, 0.0
        %v1181 = vmax.f32 %v1179, 0.0
        %1182 = vst [vmem:[%s247] sm:$0xff] %v1180
        %1183 = vst [vmem:[%s247 + $0x8] sm:$0xff] %v1181
        %s1184 = sand.u32 %s139, 1
        %s1185 = scalar_lea.sflag [#allocation4], %s1184
        %s1186 = sand.u32 %s139, 1
        %s1187 = smul.addr %s1186, 16
        %s1188 = scalar_lea.vmem [#allocation7], %s1187
        // Predicated region
        $region49: #{tpu_custom_call.1} parent=39 // pred_check
          %p1189 = pneg %p149
        $region50: #{tpu_custom_call.1} parent=39 // pred_check_branch
          %1191 = sbr.rel (%p1189) target = $region52
        $region51: #{tpu_custom_call.1} parent=39 // pred_region
          %s1193 = ssub.s32 256, 256
          %1194 = vsyncadd %s1185, %s1193
          %s1195 = smul.addr %s21, 2
          %s1196 = smul.addr %s1195, 128
          %s1197 = scalar_lea.hbm %s5, %s1196
          %s1198 = sshll.u32 %s1188, 4
          %s1199 = int_to_ptr.vmem [resolvable:$true] %s1198
          %1204 = dma.vmem_to_hbm [thread:$0]  %s1199, 256, %s1197, %s1185, 128, 128, 8
        $region52: #{tpu_custom_call.1} parent=39 // pred_fallthru
          _
      $region40: #{tpu_custom_call.1} parent=5 // pred_fallthru
        _
      %p1205 = scmp.le.s32.totalorder 2, %s16
      // Predicated region
      $region53: #{tpu_custom_call.1} parent=5 // pred_check
        %p1206 = pneg %p1205
      $region54: #{tpu_custom_call.1} parent=5 // pred_check_branch
        %1208 = sbr.rel (%p1206) target = $region56
      $region55: #{tpu_custom_call.1} parent=5 // pred_region
        %s1209 = ssub.s32 %s16, 2
        // Predicated region
        $region57: #{tpu_custom_call.1} parent=55 // pred_check
          %p1210 = pneg %p155
        $region58: #{tpu_custom_call.1} parent=55 // pred_check_branch
          %1212 = sbr.rel (%p1210) target = $region60
        $region59: #{tpu_custom_call.1} parent=55 // pred_region
          %s1213 = sand.u32 %s140, 1
          %s1214 = scalar_lea.sflag [#allocation4], %s1213
          %s1215 = sand.u32 %s140, 1
          %s1216 = smul.addr %s1215, 16
          %s1217 = scalar_lea.vmem [#allocation7], %s1216
          %1218 = dma.done %s1214, 256
        $region60: #{tpu_custom_call.1} parent=55 // pred_fallthru
          _
      $region56: #{tpu_custom_call.1} parent=5 // pred_fallthru
        _
    $region6: #{tpu_custom_call.1} parent=1 // loop_footer
      %s20 = sadd.s32 1, %s16
    $region7: #{tpu_custom_call.1} parent=1 // loop_footer_branch
      %15 = sbr.rel target = $region3
    $region8: #{tpu_custom_call.1} parent=1 // loop_exit
      _
    %1219 = vsyncpa [#allocation3], 1
    %s1220 = scalar_lea.sflag [#allocation3], 1
    %1221 = vsyncpa %s1220, 1
    %1222 = vsyncpa [#allocation6], 1
    %1223 = vsyncpa [#allocation4], 1
    %s1224 = scalar_lea.sflag [#allocation4], 1
    %1225 = vsyncpa %s1224, 1

</llo_original>
